<compile_context>
chip_gen: v7x
topology: tpu7x:2x2x1
jax: 0.10.0
libtpu: 0.0.40
codegen_flags: <defaults>
</compile_context>

<pallas_src>
import functools
import math

import jax
import jax.numpy as jnp
from jax.experimental import pallas as pl
from jax.experimental.pallas import tpu as pltpu

SQRT2 = math.sqrt(2.0)
LOG_SQRT_PI_OVER_2 = math.log(math.sqrt(math.pi / 2.0))
BN_EPS = 1e-5  # nn.BatchNorm1d default eps


def _round_up(n, m):
    return -(-n // m) * m


def _log_erfc(z):
    """log(erfc(z)), Abramowitz-Stegun 7.1.26, stable where it is actually selected (z<~4.3)."""
    # TODO(synk): torch uses torch.erf; this polynomial has ~1.5e-7 abs error (f32-grade).
    a1, a2, a3, a4, a5 = (0.254829592, -0.284496736, 1.421413741,
                          -1.453152027, 1.061405429)
    p = 0.3275911
    az = jnp.abs(z)
    t = 1.0 / (1.0 + p * az)
    poly = t * (a1 + t * (a2 + t * (a3 + t * (a4 + t * a5))))
    erfc_pos = poly * jnp.exp(-az * az)                  # erfc(|z|), single exp + single log
    return jnp.log(jnp.where(z >= 0.0, erfc_pos, 2.0 - erfc_pos))


def _log_erf_times_gauss(x):
    """pool_CRBM.log_erf_times_gauss: two-branch (x < 6 exact-ish, x >= 6 asymptotic)."""
    small = 0.5 * x * x + _log_erfc(x / SQRT2) + LOG_SQRT_PI_OVER_2
    xs = jnp.maximum(x, 1.0)                             # guard: branch only selected for x >= 6
    xs2 = xs * xs
    large = -jnp.log(xs) + jnp.log(1.0 - 1.0 / xs2 + 3.0 / (xs2 * xs2))
    return jnp.where(x < 6.0, small, large)


def _fe_stats_kernel(x_ref, f_ref, w_ref, tp_ref, tm_ref, isgp_ref, isgm_ref,
                     hlgp_ref, hlgm_ref, fe_ref, stats_ref, *,
                     pool_len, q, ck, b_tile, batch):
    """Per batch-tile: conv + online abs-max pool + dReLU log-partition + visible energy,
    writes free_energy_ind and partial BatchNorm column statistics."""
    w = w_ref[...]                                               # [CK, Hp] bf16, resident

    # ---- conv (valid, stride 1) fused with abs-max pooling (sign restored), online ----
    # Window p of the flattened one-hot row is the contiguous lane slice [p*q, p*q + K*q);
    # we read CK (>= K*q) lanes, the surplus lanes hit zero weight rows.  Short static loop
    # (P iterations), unrolled at trace time.
    pmax = None
    pmin = None
    for p in range(pool_len):
        sl = x_ref[:, p * q: p * q + ck]                         # [b_tile, CK] bf16
        c = jnp.dot(sl, w, preferred_element_type=jnp.float32)   # MXU, f32 accumulation
        pmax = c if p == 0 else jnp.maximum(pmax, c)
        pmin = c if p == 0 else jnp.minimum(pmin, c)
    # value with the largest |.|, sign kept.
    # TODO(synk): on an exact +a/-a magnitude tie PyTorch keeps the sign of the first index;
    # here the positive value wins (measure-zero for float inputs).
    pooled = jnp.where(pmax >= -pmin, pmax, pmin)                # [b_tile, Hp] = compute_output_v

    # ---- visible energy  E_v(x) = -sum_{v,q} x[b,v,q] * fields[v,q]  (pad lanes are 0) ----
    xv = x_ref[...].astype(jnp.float32)                          # one-hot 0/1 -> exact cast
    e_v = -jnp.sum(xv * f_ref[...], axis=1, keepdims=True)       # [b_tile, 1]

    # ---- logpartition_h_ind (beta = 1); rsqrt/log of gamma hoisted to the wrapper ----
    a_plus = _log_erf_times_gauss((tp_ref[...] - pooled) * isgp_ref[...]) - hlgp_ref[...]
    a_minus = _log_erf_times_gauss((pooled + tm_ref[...]) * isgm_ref[...]) - hlgm_ref[...]
    mx = jnp.maximum(a_plus, a_minus)                            # hand-rolled logaddexp
    logpart = mx + jnp.log(jnp.exp(a_plus - mx) + jnp.exp(a_minus - mx))
    # NOTE: the spec adds + 0.5*log(2*pi) * H here; it is a global constant and cancels
    # exactly in the affine-free BatchNorm, so it is dropped.

    fe = e_v - logpart                                           # free_energy_ind (up to const)
    fe_ref[...] = fe                                             # lane-dense [b_tile, Hp] store

    # ---- partial BatchNorm statistics (mask batch-padding rows) ----
    hp = fe.shape[1]
    row0 = pl.program_id(0) * b_tile
    ridx = row0 + jax.lax.broadcasted_iota(jnp.int32, (b_tile, 1), 0)
    valid = (ridx < batch).astype(jnp.float32)                   # [b_tile, 1]
    fe_v = fe * valid
    ssum = jnp.sum(fe_v, axis=0, keepdims=True)                  # [1, Hp]
    ssq = jnp.sum(fe_v * fe, axis=0, keepdims=True)              # valid * fe^2
    rid = jax.lax.broadcasted_iota(jnp.int32, (8, hp), 0)
    stats_ref[...] = (jnp.where(rid == 0, ssum, 0.0)
                      + jnp.where(rid == 1, ssq, 0.0))[None]     # [1, 8, Hp]


def _bn_kernel(fe_ref, mu_ref, inv_ref, out_ref):
    """BatchNorm1d(affine=False) finalize: (fe - mu) * rsqrt(var + eps)."""
    out_ref[...] = (fe_ref[...] - mu_ref[...]) * inv_ref[...]


def feature_net_forward(x, W, fields, theta_p, theta_m, gamma_p, gamma_m):
    """x: [B, V, Q] one-hot float; W: [H, K, Q]; fields: [V, Q]; dReLU params: [H]."""
    B, V, Q = x.shape
    H, K, Qw = W.shape
    assert Q == Qw and K <= V
    P = V - K + 1                                     # "valid" conv output length
    Hp = _round_up(H, 128)                            # lane-dense hidden axis
    CK = _round_up(K * Q, 128)                        # padded MXU contraction (180 -> 256)
    Wpad = _round_up((P - 1) * Q + CK, 128)           # >= V*Q; last window's CK slice in-bounds
    B_tile = min(256, _round_up(B, 8))                # M-tile (256 rows feeds the 256-wide MXU)
    Bp = _round_up(B, B_tile)
    num_tiles = Bp // B_tile

    # --- glue (plain JAX): flatten / pad / cast; no im2col, x ships once as bf16 ---
    x_flat = x.reshape(B, V * Q).astype(jnp.bfloat16)            # one-hot -> exact in bf16
    x_flat = jnp.pad(x_flat, ((0, Bp - B), (0, Wpad - V * Q)))

    w2 = jnp.transpose(W, (1, 2, 0)).reshape(K * Q, H).astype(jnp.float32)
    w2 = jnp.pad(w2, ((0, CK - K * Q), (0, Hp - H))).astype(jnp.bfloat16)  # zero pad rows+cols

    f2 = jnp.pad(fields.reshape(1, V * Q).astype(jnp.float32), ((0, 0), (0, Wpad - V * Q)))

    def pad_h(v, cval):
        return jnp.pad(v.astype(jnp.float32), (0, Hp - H),
                       constant_values=cval).reshape(1, Hp)

    tp = pad_h(theta_p, 0.0)                                     # theta+
    tm = pad_h(theta_m, 0.0)                                     # theta-
    isgp = pad_h(jax.lax.rsqrt(gamma_p.astype(jnp.float32)), 1.0)
    isgm = pad_h(jax.lax.rsqrt(gamma_m.astype(jnp.float32)), 1.0)
    hlgp = pad_h(0.5 * jnp.log(gamma_p.astype(jnp.float32)), 0.0)
    hlgm = pad_h(0.5 * jnp.log(gamma_m.astype(jnp.float32)), 0.0)

    tiled_row = lambda i: (i, 0)
    resident = lambda i: (0, 0)

    k1 = functools.partial(_fe_stats_kernel, pool_len=P, q=Q, ck=CK,
                           b_tile=B_tile, batch=B)
    cost1 = pl.CostEstimate(
        flops=2 * Bp * P * CK * Hp + 4 * Bp * Wpad + 30 * Bp * Hp,
        transcendentals=10 * Bp * Hp,
        bytes_accessed=(Bp * Wpad * 2 + Wpad * 4 + CK * Hp * 2 + 6 * Hp * 4
                        + Bp * Hp * 4 + num_tiles * 8 * Hp * 4))
    fe, stats = pl.pallas_call(
        k1,
        grid=(num_tiles,),
        in_specs=[
            pl.BlockSpec((B_tile, Wpad), tiled_row),     # x tile (pipelined)
            pl.BlockSpec((1, Wpad), resident),           # fields
            pl.BlockSpec((CK, Hp), resident),            # conv weights (resident)
            pl.BlockSpec((1, Hp), resident),             # theta+
            pl.BlockSpec((1, Hp), resident),             # theta-
            pl.BlockSpec((1, Hp), resident),             # rsqrt(gamma+)
            pl.BlockSpec((1, Hp), resident),             # rsqrt(gamma-)
            pl.BlockSpec((1, Hp), resident),             # 0.5*log(gamma+)
            pl.BlockSpec((1, Hp), resident),             # 0.5*log(gamma-)
        ],
        out_specs=[
            pl.BlockSpec((B_tile, Hp), tiled_row),                 # free_energy_ind
            pl.BlockSpec((1, 8, Hp), lambda i: (i, 0, 0)),         # per-tile BN partials
        ],
        out_shape=[
            jax.ShapeDtypeStruct((Bp, Hp), jnp.float32),
            jax.ShapeDtypeStruct((num_tiles, 8, Hp), jnp.float32),
        ],
        compiler_params=pltpu.CompilerParams(dimension_semantics=("parallel",)),
        cost_estimate=cost1,
    )(x_flat, f2, w2, tp, tm, isgp, isgm, hlgp, hlgm)

    # --- tiny cross-tile BN-statistics reduction (num_tiles x Hp) in the wrapper ---
    # TODO(synk): one-pass E[x^2]-E[x]^2 (clamped at 0) vs torch's two-pass variance can
    # differ in the last f32 digits when |mean| >> std.
    ssum = jnp.sum(stats[:, 0, :], axis=0)
    ssq = jnp.sum(stats[:, 1, :], axis=0)
    mu = ssum / B
    var = jnp.maximum(ssq / B - mu * mu, 0.0)                    # biased batch variance
    inv = jax.lax.rsqrt(var + BN_EPS)
    mu = mu.reshape(1, Hp)
    inv = inv.reshape(1, Hp)

    out = pl.pallas_call(
        _bn_kernel,
        grid=(num_tiles,),
        in_specs=[
            pl.BlockSpec((B_tile, Hp), tiled_row),
            pl.BlockSpec((1, Hp), resident),
            pl.BlockSpec((1, Hp), resident),
        ],
        out_specs=pl.BlockSpec((B_tile, Hp), tiled_row),
        out_shape=jax.ShapeDtypeStruct((Bp, Hp), jnp.float32),
        compiler_params=pltpu.CompilerParams(dimension_semantics=("parallel",)),
        cost_estimate=pl.CostEstimate(flops=2 * Bp * Hp, transcendentals=0,
                                      bytes_accessed=2 * Bp * Hp * 4 + 2 * Hp * 4),
    )(fe, mu, inv)

    return out[:B, :H]                                           # drop batch + lane padding


if __name__ == "__main__":
    # One hidden-convolution key ("hidden0": number=H, kernel=(K, Q)); dropout dr = 0.
    B, V, Q = 8, 16, 20        # batch, v_num, one-hot alphabet size
    H, K = 32, 9               # hidden units, conv kernel length  (P = V - K + 1 = 8)

    key = jax.random.PRNGKey(0)
    kx, kw, kf, ktp, ktm, kgp, kgm = jax.random.split(key, 7)

    # deterministic synthetic parameters (shapes per pool_CRBM.__init__)
    idx = jax.random.randint(kx, (B, V), 0, Q)
    x = jax.nn.one_hot(idx, Q, dtype=jnp.float32)                    # [B, V, Q] one-hot visible

    w_amp = math.sqrt(0.1 / V)                                       # weight_initial_amplitude
    W = w_amp * jax.random.normal(kw, (H, K, Q), dtype=jnp.float32)  # {key}_W (in_ch=1 squeezed)
    fields = 0.1 * jax.random.normal(kf, (V, Q), dtype=jnp.float32)  # "fields"
    theta_p = 0.1 * jax.random.normal(ktp, (H,), dtype=jnp.float32)  # {key}_theta+
    theta_m = 0.1 * jax.random.normal(ktm, (H,), dtype=jnp.float32)  # {key}_theta-
    gamma_p = 1.0 + 0.1 * jax.random.uniform(kgp, (H,), dtype=jnp.float32)  # {key}_gamma+ > 0
    gamma_m = 1.0 + 0.1 * jax.random.uniform(kgm, (H,), dtype=jnp.float32)  # {key}_gamma- > 0

    fwd = jax.jit(feature_net_forward)
    out = fwd(x, W, fields, theta_p, theta_m, gamma_p, gamma_m)
    out = jax.block_until_ready(out)
    assert out.shape == (B, H) and out.dtype == jnp.float32
    assert bool(jnp.all(jnp.isfinite(out)))
    print("KERNEL_OK")
</pallas_src>

<mosaic_0001>
module attributes {stable_mosaic.version = 11 : i64} {
  func.func @_bn_kernel(%arg0: i32, %arg1: memref<8x128xf32, #tpu.memory_space<vmem>>, %arg2: memref<1x128xf32, #tpu.memory_space<vmem>>, %arg3: memref<1x128xf32, #tpu.memory_space<vmem>>, %arg4: memref<8x128xf32, #tpu.memory_space<vmem>>) attributes {dimension_semantics = [#tpu.dimension_semantics<parallel>], iteration_bounds = array<i64: 1>, scalar_prefetch = 0 : i64, scratch_operands = 0 : i64, tpu.core_type = #tpu.core_type<tc>, window_params = [{transform_indices = @transform_0, window_bounds = array<i64: 8, 128>}, {pipeline_mode = #tpu.pipeline_mode<synchronous>, transform_indices = @transform_1, window_bounds = array<i64: 1, 128>}, {pipeline_mode = #tpu.pipeline_mode<synchronous>, transform_indices = @transform_2, window_bounds = array<i64: 1, 128>}, {transform_indices = @transform_3, window_bounds = array<i64: 8, 128>}]} {
    %c0 = arith.constant 0 : index
    %c0_0 = arith.constant 0 : index
    %0 = vector.load %arg1[%c0, %c0_0] : memref<8x128xf32, #tpu.memory_space<vmem>>, vector<8x128xf32>
    %c0_1 = arith.constant 0 : index
    %c0_2 = arith.constant 0 : index
    %1 = vector.load %arg2[%c0_1, %c0_2] : memref<1x128xf32, #tpu.memory_space<vmem>>, vector<1x128xf32>
    %2 = vector.broadcast %1 : vector<1x128xf32> to vector<8x128xf32>
    %3 = arith.subf %0, %2 : vector<8x128xf32>
    %c0_3 = arith.constant 0 : index
    %c0_4 = arith.constant 0 : index
    %4 = vector.load %arg3[%c0_3, %c0_4] : memref<1x128xf32, #tpu.memory_space<vmem>>, vector<1x128xf32>
    %5 = vector.broadcast %4 : vector<1x128xf32> to vector<8x128xf32>
    %6 = arith.mulf %3, %5 : vector<8x128xf32>
    %c0_5 = arith.constant 0 : index
    %c0_6 = arith.constant 0 : index
    %7 = vector.load %arg4[%c0_5, %c0_6] : memref<8x128xf32, #tpu.memory_space<vmem>>, vector<8x128xf32>
    tpu.vector_store %arg4[%c0_5, %c0_6], %6 {strides = array<i32>} : memref<8x128xf32, #tpu.memory_space<vmem>>, vector<8x128xf32>,
    return
  }
  func.func @transform_0(%arg0: i32) -> (i32, i32) {
    %c0_i32 = arith.constant 0 : i32
    %c0_i32_0 = arith.constant 0 : i32
    return %arg0, %c0_i32 : i32, i32
  }
  func.func @transform_1(%arg0: i32) -> (i32, i32) {
    %c0_i32 = arith.constant 0 : i32
    %c0_i32_0 = arith.constant 0 : i32
    %c0_i32_1 = arith.constant 0 : i32
    return %c0_i32, %c0_i32_0 : i32, i32
  }
  func.func @transform_2(%arg0: i32) -> (i32, i32) {
    %c0_i32 = arith.constant 0 : i32
    %c0_i32_0 = arith.constant 0 : i32
    %c0_i32_1 = arith.constant 0 : i32
    return %c0_i32, %c0_i32_0 : i32, i32
  }
  func.func @transform_3(%arg0: i32) -> (i32, i32) {
    %c0_i32 = arith.constant 0 : i32
    %c0_i32_0 = arith.constant 0 : i32
    return %arg0, %c0_i32 : i32, i32
  }
}

module attributes {stable_mosaic.version = 11 : i64} {
  func.func @_fe_stats_kernel(%arg0: i32, %arg1: memref<8x512xbf16, #tpu.memory_space<vmem>>, %arg2: memref<1x512xf32, #tpu.memory_space<vmem>>, %arg3: memref<256x128xbf16, #tpu.memory_space<vmem>>, %arg4: memref<1x128xf32, #tpu.memory_space<vmem>>, %arg5: memref<1x128xf32, #tpu.memory_space<vmem>>, %arg6: memref<1x128xf32, #tpu.memory_space<vmem>>, %arg7: memref<1x128xf32, #tpu.memory_space<vmem>>, %arg8: memref<1x128xf32, #tpu.memory_space<vmem>>, %arg9: memref<1x128xf32, #tpu.memory_space<vmem>>, %arg10: memref<8x128xf32, #tpu.memory_space<vmem>>, %arg11: memref<1x8x128xf32, #tpu.memory_space<vmem>>) attributes {dimension_semantics = [#tpu.dimension_semantics<parallel>], iteration_bounds = array<i64: 1>, scalar_prefetch = 0 : i64, scratch_operands = 0 : i64, tpu.core_type = #tpu.core_type<tc>, window_params = [{transform_indices = @transform_0, window_bounds = array<i64: 8, 512>}, {pipeline_mode = #tpu.pipeline_mode<synchronous>, transform_indices = @transform_1, window_bounds = array<i64: 1, 512>}, {pipeline_mode = #tpu.pipeline_mode<synchronous>, transform_indices = @transform_2, window_bounds = array<i64: 256, 128>}, {pipeline_mode = #tpu.pipeline_mode<synchronous>, transform_indices = @transform_3, window_bounds = array<i64: 1, 128>}, {pipeline_mode = #tpu.pipeline_mode<synchronous>, transform_indices = @transform_4, window_bounds = array<i64: 1, 128>}, {pipeline_mode = #tpu.pipeline_mode<synchronous>, transform_indices = @transform_5, window_bounds = array<i64: 1, 128>}, {pipeline_mode = #tpu.pipeline_mode<synchronous>, transform_indices = @transform_6, window_bounds = array<i64: 1, 128>}, {pipeline_mode = #tpu.pipeline_mode<synchronous>, transform_indices = @transform_7, window_bounds = array<i64: 1, 128>}, {pipeline_mode = #tpu.pipeline_mode<synchronous>, transform_indices = @transform_8, window_bounds = array<i64: 1, 128>}, {transform_indices = @transform_9, window_bounds = array<i64: 8, 128>}, {transform_indices = @transform_10, window_bounds = array<i64: 1, 8, 128>}]} {
    %c0 = arith.constant 0 : index
    %c0_0 = arith.constant 0 : index
    %0 = vector.load %arg3[%c0, %c0_0] : memref<256x128xbf16, #tpu.memory_space<vmem>>, vector<256x128xbf16>
    %c0_1 = arith.constant 0 : index
    %c0_2 = arith.constant 0 : index
    %1 = vector.load %arg1[%c0_1, %c0_2] : memref<8x512xbf16, #tpu.memory_space<vmem>>, vector<8x256xbf16>
    %cst = arith.constant dense<0.000000e+00> : vector<8x128xf32>
    %2 = tpu.matmul %1, %0, %cst {dimension_numbers = #tpu.dot_dimension_numbers<[1], [0], [0], [1], [0, 0, 1, 1], [], []>} : vector<8x256xbf16>, vector<256x128xbf16>, vector<8x128xf32> -> vector<8x128xf32>
    %c0_3 = arith.constant 0 : index
    %c20 = arith.constant 20 : index
    %3 = vector.load %arg1[%c0_3, %c20] : memref<8x512xbf16, #tpu.memory_space<vmem>>, vector<8x256xbf16>
    %cst_4 = arith.constant dense<0.000000e+00> : vector<8x128xf32>
    %4 = tpu.matmul %3, %0, %cst_4 {dimension_numbers = #tpu.dot_dimension_numbers<[1], [0], [0], [1], [0, 0, 1, 1], [], []>} : vector<8x256xbf16>, vector<256x128xbf16>, vector<8x128xf32> -> vector<8x128xf32>
    %5 = arith.maximumf %2, %4 : vector<8x128xf32>
    %6 = arith.minimumf %2, %4 : vector<8x128xf32>
    %c0_5 = arith.constant 0 : index
    %c40 = arith.constant 40 : index
    %7 = vector.load %arg1[%c0_5, %c40] : memref<8x512xbf16, #tpu.memory_space<vmem>>, vector<8x256xbf16>
    %cst_6 = arith.constant dense<0.000000e+00> : vector<8x128xf32>
    %8 = tpu.matmul %7, %0, %cst_6 {dimension_numbers = #tpu.dot_dimension_numbers<[1], [0], [0], [1], [0, 0, 1, 1], [], []>} : vector<8x256xbf16>, vector<256x128xbf16>, vector<8x128xf32> -> vector<8x128xf32>
    %9 = arith.maximumf %5, %8 : vector<8x128xf32>
    %10 = arith.minimumf %6, %8 : vector<8x128xf32>
    %c0_7 = arith.constant 0 : index
    %c60 = arith.constant 60 : index
    %11 = vector.load %arg1[%c0_7, %c60] : memref<8x512xbf16, #tpu.memory_space<vmem>>, vector<8x256xbf16>
    %cst_8 = arith.constant dense<0.000000e+00> : vector<8x128xf32>
    %12 = tpu.matmul %11, %0, %cst_8 {dimension_numbers = #tpu.dot_dimension_numbers<[1], [0], [0], [1], [0, 0, 1, 1], [], []>} : vector<8x256xbf16>, vector<256x128xbf16>, vector<8x128xf32> -> vector<8x128xf32>
    %13 = arith.maximumf %9, %12 : vector<8x128xf32>
    %14 = arith.minimumf %10, %12 : vector<8x128xf32>
    %c0_9 = arith.constant 0 : index
    %c80 = arith.constant 80 : index
    %15 = vector.load %arg1[%c0_9, %c80] : memref<8x512xbf16, #tpu.memory_space<vmem>>, vector<8x256xbf16>
    %cst_10 = arith.constant dense<0.000000e+00> : vector<8x128xf32>
    %16 = tpu.matmul %15, %0, %cst_10 {dimension_numbers = #tpu.dot_dimension_numbers<[1], [0], [0], [1], [0, 0, 1, 1], [], []>} : vector<8x256xbf16>, vector<256x128xbf16>, vector<8x128xf32> -> vector<8x128xf32>
    %17 = arith.maximumf %13, %16 : vector<8x128xf32>
    %18 = arith.minimumf %14, %16 : vector<8x128xf32>
    %c0_11 = arith.constant 0 : index
    %c100 = arith.constant 100 : index
    %19 = vector.load %arg1[%c0_11, %c100] : memref<8x512xbf16, #tpu.memory_space<vmem>>, vector<8x256xbf16>
    %cst_12 = arith.constant dense<0.000000e+00> : vector<8x128xf32>
    %20 = tpu.matmul %19, %0, %cst_12 {dimension_numbers = #tpu.dot_dimension_numbers<[1], [0], [0], [1], [0, 0, 1, 1], [], []>} : vector<8x256xbf16>, vector<256x128xbf16>, vector<8x128xf32> -> vector<8x128xf32>
    %21 = arith.maximumf %17, %20 : vector<8x128xf32>
    %22 = arith.minimumf %18, %20 : vector<8x128xf32>
    %c0_13 = arith.constant 0 : index
    %c120 = arith.constant 120 : index
    %23 = vector.load %arg1[%c0_13, %c120] : memref<8x512xbf16, #tpu.memory_space<vmem>>, vector<8x256xbf16>
    %cst_14 = arith.constant dense<0.000000e+00> : vector<8x128xf32>
    %24 = tpu.matmul %23, %0, %cst_14 {dimension_numbers = #tpu.dot_dimension_numbers<[1], [0], [0], [1], [0, 0, 1, 1], [], []>} : vector<8x256xbf16>, vector<256x128xbf16>, vector<8x128xf32> -> vector<8x128xf32>
    %25 = arith.maximumf %21, %24 : vector<8x128xf32>
    %26 = arith.minimumf %22, %24 : vector<8x128xf32>
    %c0_15 = arith.constant 0 : index
    %c140 = arith.constant 140 : index
    %27 = vector.load %arg1[%c0_15, %c140] : memref<8x512xbf16, #tpu.memory_space<vmem>>, vector<8x256xbf16>
    %cst_16 = arith.constant dense<0.000000e+00> : vector<8x128xf32>
    %28 = tpu.matmul %27, %0, %cst_16 {dimension_numbers = #tpu.dot_dimension_numbers<[1], [0], [0], [1], [0, 0, 1, 1], [], []>} : vector<8x256xbf16>, vector<256x128xbf16>, vector<8x128xf32> -> vector<8x128xf32>
    %29 = arith.maximumf %25, %28 : vector<8x128xf32>
    %30 = arith.minimumf %26, %28 : vector<8x128xf32>
    %cst_17 = arith.constant 0.000000e+00 : f32
    %31 = vector.broadcast %cst_17 : f32 to vector<8x128xf32>
    %32 = arith.subf %31, %30 : vector<8x128xf32>
    %33 = arith.cmpf oge, %29, %32 : vector<8x128xf32>
    %34 = arith.select %33, %29, %30 : vector<8x128xi1>, vector<8x128xf32>
    %c0_18 = arith.constant 0 : index
    %c0_19 = arith.constant 0 : index
    %35 = vector.load %arg1[%c0_18, %c0_19] : memref<8x512xbf16, #tpu.memory_space<vmem>>, vector<8x512xbf16>
    %36 = arith.extf %35 : vector<8x512xbf16> to vector<8x512xf32>
    %c0_20 = arith.constant 0 : index
    %c0_21 = arith.constant 0 : index
    %37 = vector.load %arg2[%c0_20, %c0_21] : memref<1x512xf32, #tpu.memory_space<vmem>>, vector<1x512xf32>
    %38 = vector.broadcast %37 : vector<1x512xf32> to vector<8x512xf32>
    %39 = arith.mulf %36, %38 : vector<8x512xf32>
    %cst_22 = arith.constant dense<0.000000e+00> : vector<8xf32>
    %40 = vector.multi_reduction <add>, %39, %cst_22 [1] : vector<8x512xf32> to vector<8xf32>
    %41 = vector.shape_cast %40 : vector<8xf32> to vector<8x1xf32>
    %cst_23 = arith.constant 0.000000e+00 : f32
    %42 = vector.broadcast %cst_23 : f32 to vector<8x1xf32>
    %43 = arith.subf %42, %41 : vector<8x1xf32>
    %c0_24 = arith.constant 0 : index
    %c0_25 = arith.constant 0 : index
    %44 = vector.load %arg4[%c0_24, %c0_25] : memref<1x128xf32, #tpu.memory_space<vmem>>, vector<1x128xf32>
    %45 = vector.broadcast %44 : vector<1x128xf32> to vector<8x128xf32>
    %46 = arith.subf %45, %34 : vector<8x128xf32>
    %c0_26 = arith.constant 0 : index
    %c0_27 = arith.constant 0 : index
    %47 = vector.load %arg6[%c0_26, %c0_27] : memref<1x128xf32, #tpu.memory_space<vmem>>, vector<1x128xf32>
    %48 = vector.broadcast %47 : vector<1x128xf32> to vector<8x128xf32>
    %49 = arith.mulf %46, %48 : vector<8x128xf32>
    %cst_28 = arith.constant 5.000000e-01 : f32
    %50 = vector.broadcast %cst_28 : f32 to vector<8x128xf32>
    %51 = arith.mulf %50, %49 : vector<8x128xf32>
    %52 = arith.mulf %51, %49 : vector<8x128xf32>
    %cst_29 = arith.constant 1.41421354 : f32
    %53 = vector.broadcast %cst_29 : f32 to vector<8x128xf32>
    %54 = arith.divf %49, %53 : vector<8x128xf32>
    %55 = math.absf %54 : vector<8x128xf32>
    %cst_30 = arith.constant 0.327591091 : f32
    %56 = vector.broadcast %cst_30 : f32 to vector<8x128xf32>
    %57 = arith.mulf %56, %55 : vector<8x128xf32>
    %cst_31 = arith.constant 1.000000e+00 : f32
    %58 = vector.broadcast %cst_31 : f32 to vector<8x128xf32>
    %59 = arith.addf %58, %57 : vector<8x128xf32>
    %cst_32 = arith.constant 1.000000e+00 : f32
    %60 = vector.broadcast %cst_32 : f32 to vector<8x128xf32>
    %61 = arith.divf %60, %59 : vector<8x128xf32>
    %cst_33 = arith.constant 1.06140542 : f32
    %62 = vector.broadcast %cst_33 : f32 to vector<8x128xf32>
    %63 = arith.mulf %61, %62 : vector<8x128xf32>
    %cst_34 = arith.constant -1.45315206 : f32
    %64 = vector.broadcast %cst_34 : f32 to vector<8x128xf32>
    %65 = arith.addf %64, %63 : vector<8x128xf32>
    %66 = arith.mulf %61, %65 : vector<8x128xf32>
    %cst_35 = arith.constant 1.42141378 : f32
    %67 = vector.broadcast %cst_35 : f32 to vector<8x128xf32>
    %68 = arith.addf %67, %66 : vector<8x128xf32>
    %69 = arith.mulf %61, %68 : vector<8x128xf32>
    %cst_36 = arith.constant -0.284496725 : f32
    %70 = vector.broadcast %cst_36 : f32 to vector<8x128xf32>
    %71 = arith.addf %70, %69 : vector<8x128xf32>
    %72 = arith.mulf %61, %71 : vector<8x128xf32>
    %cst_37 = arith.constant 0.254829586 : f32
    %73 = vector.broadcast %cst_37 : f32 to vector<8x128xf32>
    %74 = arith.addf %73, %72 : vector<8x128xf32>
    %75 = arith.mulf %61, %74 : vector<8x128xf32>
    %cst_38 = arith.constant 0.000000e+00 : f32
    %76 = vector.broadcast %cst_38 : f32 to vector<8x128xf32>
    %77 = arith.subf %76, %55 : vector<8x128xf32>
    %78 = arith.mulf %77, %55 : vector<8x128xf32>
    %79 = math.exp %78 : vector<8x128xf32>
    %80 = arith.mulf %75, %79 : vector<8x128xf32>
    %cst_39 = arith.constant 0.000000e+00 : f32
    %81 = vector.broadcast %cst_39 : f32 to vector<8x128xf32>
    %82 = arith.cmpf oge, %54, %81 : vector<8x128xf32>
    %cst_40 = arith.constant 2.000000e+00 : f32
    %83 = vector.broadcast %cst_40 : f32 to vector<8x128xf32>
    %84 = arith.subf %83, %80 : vector<8x128xf32>
    %85 = arith.select %82, %80, %84 : vector<8x128xi1>, vector<8x128xf32>
    %86 = math.log %85 : vector<8x128xf32>
    %87 = arith.addf %52, %86 : vector<8x128xf32>
    %cst_41 = arith.constant 0.22579135 : f32
    %88 = vector.broadcast %cst_41 : f32 to vector<8x128xf32>
    %89 = arith.addf %87, %88 : vector<8x128xf32>
    %cst_42 = arith.constant 1.000000e+00 : f32
    %90 = vector.broadcast %cst_42 : f32 to vector<8x128xf32>
    %91 = arith.maximumf %49, %90 : vector<8x128xf32>
    %92 = arith.mulf %91, %91 : vector<8x128xf32>
    %93 = math.log %91 : vector<8x128xf32>
    %cst_43 = arith.constant 0.000000e+00 : f32
    %94 = vector.broadcast %cst_43 : f32 to vector<8x128xf32>
    %95 = arith.subf %94, %93 : vector<8x128xf32>
    %cst_44 = arith.constant 1.000000e+00 : f32
    %96 = vector.broadcast %cst_44 : f32 to vector<8x128xf32>
    %97 = arith.divf %96, %92 : vector<8x128xf32>
    %cst_45 = arith.constant 1.000000e+00 : f32
    %98 = vector.broadcast %cst_45 : f32 to vector<8x128xf32>
    %99 = arith.subf %98, %97 : vector<8x128xf32>
    %100 = arith.mulf %92, %92 : vector<8x128xf32>
    %cst_46 = arith.constant 3.000000e+00 : f32
    %101 = vector.broadcast %cst_46 : f32 to vector<8x128xf32>
    %102 = arith.divf %101, %100 : vector<8x128xf32>
    %103 = arith.addf %99, %102 : vector<8x128xf32>
    %104 = math.log %103 : vector<8x128xf32>
    %105 = arith.addf %95, %104 : vector<8x128xf32>
    %cst_47 = arith.constant 6.000000e+00 : f32
    %106 = vector.broadcast %cst_47 : f32 to vector<8x128xf32>
    %107 = arith.cmpf olt, %49, %106 : vector<8x128xf32>
    %108 = arith.select %107, %89, %105 : vector<8x128xi1>, vector<8x128xf32>
    %c0_48 = arith.constant 0 : index
    %c0_49 = arith.constant 0 : index
    %109 = vector.load %arg8[%c0_48, %c0_49] : memref<1x128xf32, #tpu.memory_space<vmem>>, vector<1x128xf32>
    %110 = vector.broadcast %109 : vector<1x128xf32> to vector<8x128xf32>
    %111 = arith.subf %108, %110 : vector<8x128xf32>
    %c0_50 = arith.constant 0 : index
    %c0_51 = arith.constant 0 : index
    %112 = vector.load %arg5[%c0_50, %c0_51] : memref<1x128xf32, #tpu.memory_space<vmem>>, vector<1x128xf32>
    %113 = vector.broadcast %112 : vector<1x128xf32> to vector<8x128xf32>
    %114 = arith.addf %34, %113 : vector<8x128xf32>
    %c0_52 = arith.constant 0 : index
    %c0_53 = arith.constant 0 : index
    %115 = vector.load %arg7[%c0_52, %c0_53] : memref<1x128xf32, #tpu.memory_space<vmem>>, vector<1x128xf32>
    %116 = vector.broadcast %115 : vector<1x128xf32> to vector<8x128xf32>
    %117 = arith.mulf %114, %116 : vector<8x128xf32>
    %cst_54 = arith.constant 5.000000e-01 : f32
    %118 = vector.broadcast %cst_54 : f32 to vector<8x128xf32>
    %119 = arith.mulf %118, %117 : vector<8x128xf32>
    %120 = arith.mulf %119, %117 : vector<8x128xf32>
    %cst_55 = arith.constant 1.41421354 : f32
    %121 = vector.broadcast %cst_55 : f32 to vector<8x128xf32>
    %122 = arith.divf %117, %121 : vector<8x128xf32>
    %123 = math.absf %122 : vector<8x128xf32>
    %cst_56 = arith.constant 0.327591091 : f32
    %124 = vector.broadcast %cst_56 : f32 to vector<8x128xf32>
    %125 = arith.mulf %124, %123 : vector<8x128xf32>
    %cst_57 = arith.constant 1.000000e+00 : f32
    %126 = vector.broadcast %cst_57 : f32 to vector<8x128xf32>
    %127 = arith.addf %126, %125 : vector<8x128xf32>
    %cst_58 = arith.constant 1.000000e+00 : f32
    %128 = vector.broadcast %cst_58 : f32 to vector<8x128xf32>
    %129 = arith.divf %128, %127 : vector<8x128xf32>
    %cst_59 = arith.constant 1.06140542 : f32
    %130 = vector.broadcast %cst_59 : f32 to vector<8x128xf32>
    %131 = arith.mulf %129, %130 : vector<8x128xf32>
    %cst_60 = arith.constant -1.45315206 : f32
    %132 = vector.broadcast %cst_60 : f32 to vector<8x128xf32>
    %133 = arith.addf %132, %131 : vector<8x128xf32>
    %134 = arith.mulf %129, %133 : vector<8x128xf32>
    %cst_61 = arith.constant 1.42141378 : f32
    %135 = vector.broadcast %cst_61 : f32 to vector<8x128xf32>
    %136 = arith.addf %135, %134 : vector<8x128xf32>
    %137 = arith.mulf %129, %136 : vector<8x128xf32>
    %cst_62 = arith.constant -0.284496725 : f32
    %138 = vector.broadcast %cst_62 : f32 to vector<8x128xf32>
    %139 = arith.addf %138, %137 : vector<8x128xf32>
    %140 = arith.mulf %129, %139 : vector<8x128xf32>
    %cst_63 = arith.constant 0.254829586 : f32
    %141 = vector.broadcast %cst_63 : f32 to vector<8x128xf32>
    %142 = arith.addf %141, %140 : vector<8x128xf32>
    %143 = arith.mulf %129, %142 : vector<8x128xf32>
    %cst_64 = arith.constant 0.000000e+00 : f32
    %144 = vector.broadcast %cst_64 : f32 to vector<8x128xf32>
    %145 = arith.subf %144, %123 : vector<8x128xf32>
    %146 = arith.mulf %145, %123 : vector<8x128xf32>
    %147 = math.exp %146 : vector<8x128xf32>
    %148 = arith.mulf %143, %147 : vector<8x128xf32>
    %cst_65 = arith.constant 0.000000e+00 : f32
    %149 = vector.broadcast %cst_65 : f32 to vector<8x128xf32>
    %150 = arith.cmpf oge, %122, %149 : vector<8x128xf32>
    %cst_66 = arith.constant 2.000000e+00 : f32
    %151 = vector.broadcast %cst_66 : f32 to vector<8x128xf32>
    %152 = arith.subf %151, %148 : vector<8x128xf32>
    %153 = arith.select %150, %148, %152 : vector<8x128xi1>, vector<8x128xf32>
    %154 = math.log %153 : vector<8x128xf32>
    %155 = arith.addf %120, %154 : vector<8x128xf32>
    %cst_67 = arith.constant 0.22579135 : f32
    %156 = vector.broadcast %cst_67 : f32 to vector<8x128xf32>
    %157 = arith.addf %155, %156 : vector<8x128xf32>
    %cst_68 = arith.constant 1.000000e+00 : f32
    %158 = vector.broadcast %cst_68 : f32 to vector<8x128xf32>
    %159 = arith.maximumf %117, %158 : vector<8x128xf32>
    %160 = arith.mulf %159, %159 : vector<8x128xf32>
    %161 = math.log %159 : vector<8x128xf32>
    %cst_69 = arith.constant 0.000000e+00 : f32
    %162 = vector.broadcast %cst_69 : f32 to vector<8x128xf32>
    %163 = arith.subf %162, %161 : vector<8x128xf32>
    %cst_70 = arith.constant 1.000000e+00 : f32
    %164 = vector.broadcast %cst_70 : f32 to vector<8x128xf32>
    %165 = arith.divf %164, %160 : vector<8x128xf32>
    %cst_71 = arith.constant 1.000000e+00 : f32
    %166 = vector.broadcast %cst_71 : f32 to vector<8x128xf32>
    %167 = arith.subf %166, %165 : vector<8x128xf32>
    %168 = arith.mulf %160, %160 : vector<8x128xf32>
    %cst_72 = arith.constant 3.000000e+00 : f32
    %169 = vector.broadcast %cst_72 : f32 to vector<8x128xf32>
    %170 = arith.divf %169, %168 : vector<8x128xf32>
    %171 = arith.addf %167, %170 : vector<8x128xf32>
    %172 = math.log %171 : vector<8x128xf32>
    %173 = arith.addf %163, %172 : vector<8x128xf32>
    %cst_73 = arith.constant 6.000000e+00 : f32
    %174 = vector.broadcast %cst_73 : f32 to vector<8x128xf32>
    %175 = arith.cmpf olt, %117, %174 : vector<8x128xf32>
    %176 = arith.select %175, %157, %173 : vector<8x128xi1>, vector<8x128xf32>
    %c0_74 = arith.constant 0 : index
    %c0_75 = arith.constant 0 : index
    %177 = vector.load %arg9[%c0_74, %c0_75] : memref<1x128xf32, #tpu.memory_space<vmem>>, vector<1x128xf32>
    %178 = vector.broadcast %177 : vector<1x128xf32> to vector<8x128xf32>
    %179 = arith.subf %176, %178 : vector<8x128xf32>
    %180 = arith.maximumf %111, %179 : vector<8x128xf32>
    %181 = arith.subf %111, %180 : vector<8x128xf32>
    %182 = math.exp %181 : vector<8x128xf32>
    %183 = arith.subf %179, %180 : vector<8x128xf32>
    %184 = math.exp %183 : vector<8x128xf32>
    %185 = arith.addf %182, %184 : vector<8x128xf32>
    %186 = math.log %185 : vector<8x128xf32>
    %187 = arith.addf %180, %186 : vector<8x128xf32>
    %188 = vector.broadcast %43 : vector<8x1xf32> to vector<8x128xf32>
    %189 = arith.subf %188, %187 : vector<8x128xf32>
    %c0_76 = arith.constant 0 : index
    %c0_77 = arith.constant 0 : index
    %190 = vector.load %arg10[%c0_76, %c0_77] : memref<8x128xf32, #tpu.memory_space<vmem>>, vector<8x128xf32>
    tpu.vector_store %arg10[%c0_76, %c0_77], %189 {strides = array<i32>} : memref<8x128xf32, #tpu.memory_space<vmem>>, vector<8x128xf32>,
    %c8_i32 = arith.constant 8 : i32
    %191 = arith.muli %arg0, %c8_i32 : i32
    %192 = tpu.iota {dimensions = array<i32: 0>} : vector<8x1xi32>
    %193 = vector.broadcast %191 : i32 to vector<8x1xi32>
    %194 = arith.addi %193, %192 : vector<8x1xi32>
    %c8_i32_78 = arith.constant 8 : i32
    %195 = vector.broadcast %c8_i32_78 : i32 to vector<8x1xi32>
    %196 = arith.cmpi slt, %194, %195 : vector<8x1xi32>
    %197 = arith.extui %196 : vector<8x1xi1> to vector<8x1xi32>
    %198 = arith.sitofp %197 : vector<8x1xi32> to vector<8x1xf32>
    %199 = vector.broadcast %198 : vector<8x1xf32> to vector<8x128xf32>
    %200 = arith.mulf %189, %199 : vector<8x128xf32>
    %cst_79 = arith.constant dense<0.000000e+00> : vector<128xf32>
    %201 = vector.multi_reduction <add>, %200, %cst_79 [0] : vector<8x128xf32> to vector<128xf32>
    %202 = vector.shape_cast %201 : vector<128xf32> to vector<1x128xf32>
    %203 = arith.mulf %200, %189 : vector<8x128xf32>
    %cst_80 = arith.constant dense<0.000000e+00> : vector<128xf32>
    %204 = vector.multi_reduction <add>, %203, %cst_80 [0] : vector<8x128xf32> to vector<128xf32>
    %205 = vector.shape_cast %204 : vector<128xf32> to vector<1x128xf32>
    %206 = tpu.iota {dimensions = array<i32: 0>} : vector<8x128xi32>
    %c0_i32 = arith.constant 0 : i32
    %207 = vector.broadcast %c0_i32 : i32 to vector<8x128xi32>
    %208 = arith.cmpi eq, %206, %207 : vector<8x128xi32>
    %cst_81 = arith.constant 0.000000e+00 : f32
    %209 = vector.shape_cast %202 : vector<1x128xf32> to vector<1x128xf32>
    %210 = vector.broadcast %209 : vector<1x128xf32> to vector<8x128xf32>
    %211 = vector.broadcast %cst_81 : f32 to vector<8x128xf32>
    %212 = arith.select %208, %210, %211 : vector<8x128xi1>, vector<8x128xf32>
    %c1_i32 = arith.constant 1 : i32
    %213 = vector.broadcast %c1_i32 : i32 to vector<8x128xi32>
    %214 = arith.cmpi eq, %206, %213 : vector<8x128xi32>
    %cst_82 = arith.constant 0.000000e+00 : f32
    %215 = vector.shape_cast %205 : vector<1x128xf32> to vector<1x128xf32>
    %216 = vector.broadcast %215 : vector<1x128xf32> to vector<8x128xf32>
    %217 = vector.broadcast %cst_82 : f32 to vector<8x128xf32>
    %218 = arith.select %214, %216, %217 : vector<8x128xi1>, vector<8x128xf32>
    %219 = arith.addf %212, %218 : vector<8x128xf32>
    %220 = vector.shape_cast %219 : vector<8x128xf32> to vector<1x8x128xf32>
    %c0_83 = arith.constant 0 : index
    %c0_84 = arith.constant 0 : index
    %c0_85 = arith.constant 0 : index
    %221 = vector.load %arg11[%c0_83, %c0_84, %c0_85] : memref<1x8x128xf32, #tpu.memory_space<vmem>>, vector<1x8x128xf32>
    tpu.vector_store %arg11[%c0_83, %c0_84, %c0_85], %220 {strides = array<i32>} : memref<1x8x128xf32, #tpu.memory_space<vmem>>, vector<1x8x128xf32>,
    return
  }
  func.func @transform_0(%arg0: i32) -> (i32, i32) {
    %c0_i32 = arith.constant 0 : i32
    %c0_i32_0 = arith.constant 0 : i32
    return %arg0, %c0_i32 : i32, i32
  }
  func.func @transform_1(%arg0: i32) -> (i32, i32) {
    %c0_i32 = arith.constant 0 : i32
    %c0_i32_0 = arith.constant 0 : i32
    %c0_i32_1 = arith.constant 0 : i32
    return %c0_i32, %c0_i32_0 : i32, i32
  }
  func.func @transform_2(%arg0: i32) -> (i32, i32) {
    %c0_i32 = arith.constant 0 : i32
    %c0_i32_0 = arith.constant 0 : i32
    %c0_i32_1 = arith.constant 0 : i32
    return %c0_i32, %c0_i32_0 : i32, i32
  }
  func.func @transform_3(%arg0: i32) -> (i32, i32) {
    %c0_i32 = arith.constant 0 : i32
    %c0_i32_0 = arith.constant 0 : i32
    %c0_i32_1 = arith.constant 0 : i32
    return %c0_i32, %c0_i32_0 : i32, i32
  }
  func.func @transform_4(%arg0: i32) -> (i32, i32) {
    %c0_i32 = arith.constant 0 : i32
    %c0_i32_0 = arith.constant 0 : i32
    %c0_i32_1 = arith.constant 0 : i32
    return %c0_i32, %c0_i32_0 : i32, i32
  }
  func.func @transform_5(%arg0: i32) -> (i32, i32) {
    %c0_i32 = arith.constant 0 : i32
    %c0_i32_0 = arith.constant 0 : i32
    %c0_i32_1 = arith.constant 0 : i32
    return %c0_i32, %c0_i32_0 : i32, i32
  }
  func.func @transform_6(%arg0: i32) -> (i32, i32) {
    %c0_i32 = arith.constant 0 : i32
    %c0_i32_0 = arith.constant 0 : i32
    %c0_i32_1 = arith.constant 0 : i32
    return %c0_i32, %c0_i32_0 : i32, i32
  }
  func.func @transform_7(%arg0: i32) -> (i32, i32) {
    %c0_i32 = arith.constant 0 : i32
    %c0_i32_0 = arith.constant 0 : i32
    %c0_i32_1 = arith.constant 0 : i32
    return %c0_i32, %c0_i32_0 : i32, i32
  }
  func.func @transform_8(%arg0: i32) -> (i32, i32) {
    %c0_i32 = arith.constant 0 : i32
    %c0_i32_0 = arith.constant 0 : i32
    %c0_i32_1 = arith.constant 0 : i32
    return %c0_i32, %c0_i32_0 : i32, i32
  }
  func.func @transform_9(%arg0: i32) -> (i32, i32) {
    %c0_i32 = arith.constant 0 : i32
    %c0_i32_0 = arith.constant 0 : i32
    return %arg0, %c0_i32 : i32, i32
  }
  func.func @transform_10(%arg0: i32) -> (i32, i32, i32) {
    %c0_i32 = arith.constant 0 : i32
    %c0_i32_0 = arith.constant 0 : i32
    %c0_i32_1 = arith.constant 0 : i32
    return %arg0, %c0_i32, %c0_i32_0 : i32, i32, i32
  }
}

</mosaic_0001>

<llo_original>
// kernel: feature_net_forward.3
$region0: #{feature_net_forward.3}
  #allocation0 [shape = 'u32[]', space=smem, size = 0x4, offset = 0x4, fixed_abs, tag = 'smem constant byte address 0x4 - core index']
  #allocation1 [shape = 'u32[144,128]{1,0:T(1,128)}', space=vmem, size = 0x12000, scoped, tag = 'internal scratch']
  %s0 = inlined_call_operand.vmem [shape: f32[8,128], index: 0, kind: input, shape index: {}]
  %s1 = inlined_call_operand.vmem [shape: f32[1,128], index: 1, kind: input, shape index: {}]
  %s2 = inlined_call_operand.vmem [shape: f32[1,128], index: 2, kind: input, shape index: {}]
  %s3 = inlined_call_operand.hbm [shape: f32[8,128], index: 3, kind: output, shape index: {}]
  %s4 = sld [smem:[#allocation0]]
  $region22: #{feature_net_forward.3} parent=0
    _
  %s6 = ssub.s32 1, %s4
  %s7 = scalar_select 0, %s6, %s4
  $region1: #{feature_net_forward.3} parent=0
    #allocation2 [shape = 'u8[4096]{0}', space=vmem, size = 0x1000, scoped, tag = 'output window, operand 0, single buffered']
    #allocation3 [shape = 's32[1]{0}', space=sflag, size = 0x4, scoped, tag = 'scoped memory for feature_net_forward.3']
    %8 = vsyncpa [#allocation3], 0
    // Predicated region
    $region2: #{feature_net_forward.3} parent=1 // pred_check
      _
    $region3: #{feature_net_forward.3} parent=1 // pred_check_branch
      %10 = sbr.rel (0) target = $region5
    $region4: #{feature_net_forward.3} parent=1 // pred_region
      _
    $region5: #{feature_net_forward.3} parent=1 // pred_fallthru
      _
    // Predicated region
    $region6: #{feature_net_forward.3} parent=1 // pred_check
      _
    $region7: #{feature_net_forward.3} parent=1 // pred_check_branch
      %12 = sbr.rel (0) target = $region9
    $region8: #{feature_net_forward.3} parent=1 // pred_region
      _
    $region9: #{feature_net_forward.3} parent=1 // pred_fallthru
      _
    // Predicated region
    $region10: #{feature_net_forward.3} parent=1 // pred_check
      _
    $region11: #{feature_net_forward.3} parent=1 // pred_check_branch
      %14 = sbr.rel (0) target = $region13
    $region12: #{feature_net_forward.3} parent=1 // pred_region
      _
    $region13: #{feature_net_forward.3} parent=1 // pred_fallthru
      _
    %v15 = vld [vmem:[%s0] sm:$0xff]
    %v16 = vld [vmem:[%s1] sm:$0x1]
    %v18 = vlaneseq
    %v19 = vshrl.u32 %v18, 7
    %v20 = vsub.s32 0, %v19
    %v21 = vrot.slane %v16, %v20
    %v23 = vsub.f32 %v15, %v21
    %v24 = vld [vmem:[%s2] sm:$0x1]
    %v26 = vlaneseq
    %v27 = vshrl.u32 %v26, 7
    %v28 = vsub.s32 0, %v27
    %v29 = vrot.slane %v24, %v28
    %v31 = vmul.f32 %v23, %v29
    %32 = vst [vmem:[#allocation2] sm:$0xff] %v31
    // Predicated region
    $region14: #{feature_net_forward.3} parent=1 // pred_check
      _
    $region15: #{feature_net_forward.3} parent=1 // pred_check_branch
      %34 = sbr.rel (0) target = $region17
    $region16: #{feature_net_forward.3} parent=1 // pred_region
      %s36 = ssub.s32 128, 128
      %37 = vsyncadd [#allocation3], %s36
      %s39 = sshll.u32 [#allocation2], 4
      %s40 = int_to_ptr.vmem [resolvable:$true] %s39
      %42 = dma.vmem_to_hbm [thread:$0]  %s40, 128, %s3, [#allocation3]
    $region17: #{feature_net_forward.3} parent=1 // pred_fallthru
      _
    // Predicated region
    $region18: #{feature_net_forward.3} parent=1 // pred_check
      _
    $region19: #{feature_net_forward.3} parent=1 // pred_check_branch
      %44 = sbr.rel (0) target = $region21
    $region20: #{feature_net_forward.3} parent=1 // pred_region
      %45 = dma.done [#allocation3], 128
    $region21: #{feature_net_forward.3} parent=1 // pred_fallthru
      _
    %46 = vsyncpa [#allocation3], 1

// kernel: feature_net_forward.2
$region0: #{feature_net_forward.2}
  #allocation0 [shape = 'u32[]', space=smem, size = 0x4, offset = 0x4, fixed_abs, tag = 'smem constant byte address 0x4 - core index']
  #allocation1 [shape = 'u32[144,128]{1,0:T(1,128)}', space=vmem, size = 0x12000, scoped, tag = 'internal scratch']
  %s0 = inlined_call_operand.vmem [shape: bf16[8,512], index: 0, kind: input, shape index: {}]
  %s1 = inlined_call_operand.vmem [shape: f32[1,512], index: 1, kind: input, shape index: {}]
  %s2 = inlined_call_operand.vmem [shape: bf16[256,128], index: 2, kind: input, shape index: {}]
  %s3 = inlined_call_operand.vmem [shape: f32[1,128], index: 3, kind: input, shape index: {}]
  %s4 = inlined_call_operand.vmem [shape: f32[1,128], index: 4, kind: input, shape index: {}]
  %s5 = inlined_call_operand.vmem [shape: f32[1,128], index: 5, kind: input, shape index: {}]
  %s6 = inlined_call_operand.vmem [shape: f32[1,128], index: 6, kind: input, shape index: {}]
  %s7 = inlined_call_operand.vmem [shape: f32[1,128], index: 7, kind: input, shape index: {}]
  %s8 = inlined_call_operand.vmem [shape: f32[1,128], index: 8, kind: input, shape index: {}]
  %s9 = inlined_call_operand.vmem [shape: f32[8,128], index: 9, kind: output, shape index: {0}]
  %s10 = inlined_call_operand.vmem [shape: f32[1,8,128], index: 10, kind: output, shape index: {1}]
  %11 = xla_tuple %s9, %s10
  %s12 = sld [smem:[#allocation0]]
  $region54: #{feature_net_forward.2} parent=0
    _
  %s14 = ssub.s32 1, %s12
  %s15 = scalar_select 0, %s14, %s12
  // Predicated region
  $region2: #{feature_net_forward.2} parent=0 // pred_check
    _
  $region3: #{feature_net_forward.2} parent=0 // pred_check_branch
    %17 = sbr.rel (0) target = $region5
  $region4: #{feature_net_forward.2} parent=0 // pred_region
    _
  $region5: #{feature_net_forward.2} parent=0 // pred_fallthru
    _
  // Predicated region
  $region6: #{feature_net_forward.2} parent=0 // pred_check
    _
  $region7: #{feature_net_forward.2} parent=0 // pred_check_branch
    %19 = sbr.rel (0) target = $region9
  $region8: #{feature_net_forward.2} parent=0 // pred_region
    _
  $region9: #{feature_net_forward.2} parent=0 // pred_fallthru
    _
  // Predicated region
  $region10: #{feature_net_forward.2} parent=0 // pred_check
    _
  $region11: #{feature_net_forward.2} parent=0 // pred_check_branch
    %21 = sbr.rel (0) target = $region13
  $region12: #{feature_net_forward.2} parent=0 // pred_region
    _
  $region13: #{feature_net_forward.2} parent=0 // pred_fallthru
    _
  // Predicated region
  $region14: #{feature_net_forward.2} parent=0 // pred_check
    _
  $region15: #{feature_net_forward.2} parent=0 // pred_check_branch
    %23 = sbr.rel (0) target = $region17
  $region16: #{feature_net_forward.2} parent=0 // pred_region
    _
  $region17: #{feature_net_forward.2} parent=0 // pred_fallthru
    _
  // Predicated region
  $region18: #{feature_net_forward.2} parent=0 // pred_check
    _
  $region19: #{feature_net_forward.2} parent=0 // pred_check_branch
    %25 = sbr.rel (0) target = $region21
  $region20: #{feature_net_forward.2} parent=0 // pred_region
    _
  $region21: #{feature_net_forward.2} parent=0 // pred_fallthru
    _
  // Predicated region
  $region22: #{feature_net_forward.2} parent=0 // pred_check
    _
  $region23: #{feature_net_forward.2} parent=0 // pred_check_branch
    %27 = sbr.rel (0) target = $region25
  $region24: #{feature_net_forward.2} parent=0 // pred_region
    _
  $region25: #{feature_net_forward.2} parent=0 // pred_fallthru
    _
  // Predicated region
  $region26: #{feature_net_forward.2} parent=0 // pred_check
    _
  $region27: #{feature_net_forward.2} parent=0 // pred_check_branch
    %29 = sbr.rel (0) target = $region29
  $region28: #{feature_net_forward.2} parent=0 // pred_region
    _
  $region29: #{feature_net_forward.2} parent=0 // pred_fallthru
    _
  // Predicated region
  $region30: #{feature_net_forward.2} parent=0 // pred_check
    _
  $region31: #{feature_net_forward.2} parent=0 // pred_check_branch
    %31 = sbr.rel (0) target = $region33
  $region32: #{feature_net_forward.2} parent=0 // pred_region
    _
  $region33: #{feature_net_forward.2} parent=0 // pred_fallthru
    _
  // Predicated region
  $region34: #{feature_net_forward.2} parent=0 // pred_check
    _
  $region35: #{feature_net_forward.2} parent=0 // pred_check_branch
    %33 = sbr.rel (0) target = $region37
  $region36: #{feature_net_forward.2} parent=0 // pred_region
    _
  $region37: #{feature_net_forward.2} parent=0 // pred_fallthru
    _
  %v35 = vld [vmem:[%s2] sm:$0xf]
  %v36 = vld [vmem:[%s2 + $0x4] sm:$0xf]
  %v37 = vld [vmem:[%s2 + $0x8] sm:$0xf]
  %v38 = vld [vmem:[%s2 + $0xc] sm:$0xf]
  %v39 = vld [vmem:[%s2 + $0x10] sm:$0xf]
  %v40 = vld [vmem:[%s2 + $0x14] sm:$0xf]
  %v41 = vld [vmem:[%s2 + $0x18] sm:$0xf]
  %v42 = vld [vmem:[%s2 + $0x1c] sm:$0xf]
  %v43 = vld [vmem:[%s2 + $0x20] sm:$0xf]
  %v44 = vld [vmem:[%s2 + $0x24] sm:$0xf]
  %v45 = vld [vmem:[%s2 + $0x28] sm:$0xf]
  %v46 = vld [vmem:[%s2 + $0x2c] sm:$0xf]
  %v47 = vld [vmem:[%s2 + $0x30] sm:$0xf]
  %v48 = vld [vmem:[%s2 + $0x34] sm:$0xf]
  %v49 = vld [vmem:[%s2 + $0x38] sm:$0xf]
  %v50 = vld [vmem:[%s2 + $0x3c] sm:$0xf]
  %v51 = vld [vmem:[%s2 + $0x40] sm:$0xf]
  %v52 = vld [vmem:[%s2 + $0x44] sm:$0xf]
  %v53 = vld [vmem:[%s2 + $0x48] sm:$0xf]
  %v54 = vld [vmem:[%s2 + $0x4c] sm:$0xf]
  %v55 = vld [vmem:[%s2 + $0x50] sm:$0xf]
  %v56 = vld [vmem:[%s2 + $0x54] sm:$0xf]
  %v57 = vld [vmem:[%s2 + $0x58] sm:$0xf]
  %v58 = vld [vmem:[%s2 + $0x5c] sm:$0xf]
  %v59 = vld [vmem:[%s2 + $0x60] sm:$0xf]
  %v60 = vld [vmem:[%s2 + $0x64] sm:$0xf]
  %v61 = vld [vmem:[%s2 + $0x68] sm:$0xf]
  %v62 = vld [vmem:[%s2 + $0x6c] sm:$0xf]
  %v63 = vld [vmem:[%s2 + $0x70] sm:$0xf]
  %v64 = vld [vmem:[%s2 + $0x74] sm:$0xf]
  %v65 = vld [vmem:[%s2 + $0x78] sm:$0xf]
  %v66 = vld [vmem:[%s2 + $0x7c] sm:$0xf]
  %v67 = vld [vmem:[%s0] sm:$0xff]
  %v69 = vunpack.c.l.b16 %v67
  %v70 = vunpack.c.h.b16 %v67
  %v71 = vpack.c.b16 %v69, %v69
  %v72 = vpack.c.b16 %v70, %v70
  %v107 = vunpack.c.l.b16 %v35
  %v108 = vunpack.c.l.b16 %v36
  %v109 = vunpack.c.l.b16 %v37
  %v110 = vunpack.c.l.b16 %v38
  %v111 = vunpack.c.l.b16 %v39
  %v112 = vunpack.c.l.b16 %v40
  %v113 = vunpack.c.l.b16 %v41
  %v114 = vunpack.c.l.b16 %v42
  %v115 = vunpack.c.l.b16 %v43
  %v116 = vunpack.c.l.b16 %v44
  %v117 = vunpack.c.l.b16 %v45
  %v118 = vunpack.c.l.b16 %v46
  %v119 = vunpack.c.l.b16 %v47
  %v120 = vunpack.c.l.b16 %v48
  %v121 = vunpack.c.l.b16 %v49
  %v122 = vunpack.c.l.b16 %v50
  %v123 = vunpack.c.l.b16 %v51
  %v124 = vunpack.c.l.b16 %v52
  %v125 = vunpack.c.l.b16 %v53
  %v126 = vunpack.c.l.b16 %v54
  %v127 = vunpack.c.l.b16 %v55
  %v128 = vunpack.c.l.b16 %v56
  %v129 = vunpack.c.l.b16 %v57
  %v130 = vunpack.c.l.b16 %v58
  %v131 = vunpack.c.l.b16 %v59
  %v132 = vunpack.c.l.b16 %v60
  %v133 = vunpack.c.l.b16 %v61
  %v134 = vunpack.c.l.b16 %v62
  %v135 = vunpack.c.l.b16 %v63
  %v136 = vunpack.c.l.b16 %v64
  %v137 = vunpack.c.l.b16 %v65
  %v138 = vunpack.c.l.b16 %v66
  %v139 = vpack.c.b16 %v108, %v107
  %v140 = vpack.c.b16 %v110, %v109
  %v141 = vpack.c.b16 %v112, %v111
  %v142 = vpack.c.b16 %v114, %v113
  %v143 = vpack.c.b16 %v116, %v115
  %v144 = vpack.c.b16 %v118, %v117
  %v145 = vpack.c.b16 %v120, %v119
  %v146 = vpack.c.b16 %v122, %v121
  %v147 = vpack.c.b16 %v124, %v123
  %v148 = vpack.c.b16 %v126, %v125
  %v149 = vpack.c.b16 %v128, %v127
  %v150 = vpack.c.b16 %v130, %v129
  %v151 = vpack.c.b16 %v132, %v131
  %v152 = vpack.c.b16 %v134, %v133
  %v153 = vpack.c.b16 %v136, %v135
  %v154 = vpack.c.b16 %v138, %v137
  %171 = vmatprep.subr.bf16.mxu0 0
  %172 = vmatpush1.bf16.msra.mxu0 %v139
  %173 = vmatprep.subr.bf16.mxu0 0
  %174 = vmatpush1.bf16.msra.mxu0 %v140
  %175 = vmatprep.subr.bf16.mxu0 0
  %176 = vmatpush1.bf16.msra.mxu0 %v141
  %177 = vmatprep.subr.bf16.mxu0 0
  %178 = vmatpush1.bf16.msra.mxu0 %v142
  %179 = vmatprep.subr.bf16.mxu0 0
  %180 = vmatpush1.bf16.msra.mxu0 %v143
  %181 = vmatprep.subr.bf16.mxu0 0
  %182 = vmatpush1.bf16.msra.mxu0 %v144
  %183 = vmatprep.subr.bf16.mxu0 0
  %184 = vmatpush1.bf16.msra.mxu0 %v145
  %185 = vmatprep.subr.bf16.mxu0 0
  %186 = vmatpush1.bf16.msra.mxu0 %v146
  %187 = vmatprep.subr.bf16.mxu0 0
  %188 = vmatpush1.bf16.msra.mxu0 %v147
  %189 = vmatprep.subr.bf16.mxu0 0
  %190 = vmatpush1.bf16.msra.mxu0 %v148
  %191 = vmatprep.subr.bf16.mxu0 0
  %192 = vmatpush1.bf16.msra.mxu0 %v149
  %193 = vmatprep.subr.bf16.mxu0 0
  %194 = vmatpush1.bf16.msra.mxu0 %v150
  %195 = vmatprep.subr.bf16.mxu0 0
  %196 = vmatpush1.bf16.msra.mxu0 %v151
  %197 = vmatprep.subr.bf16.mxu0 0
  %198 = vmatpush1.bf16.msra.mxu0 %v152
  %199 = vmatprep.subr.bf16.mxu0 0
  %200 = vmatpush1.bf16.msra.mxu0 %v153
  %201 = vmatprep.subr.bf16.mxu0 0
  %202 = vmatpush1.bf16.msra.mxu0 %v154
  %203 = vmatprep.mubr.bf16.mxu0 %v72
  %204 = vmatmul.mubr.bf16.gmra.mrb[0].mxu0 %v71
  %v205 = vpop.f32.mrb[0].mxu0
  %v206 = vadd.f32 0.0, %v205
  %v207 = vpop.f32.mrb[0].mxu0
  %v208 = vpop.f32.mrb[0].mxu0
  %v209 = vpop.f32.mrb[0].mxu0
  %210 = vdwg.mxu0
  %v211 = vld [vmem:[%s0] sm:$0xff]
  %v212 = vld [vmem:[%s0 + $0x8] sm:$0xf]
  %v215 = vunpack.c.l.b16 %v211
  %v216 = vunpack.c.h.b16 %v211
  %v217 = vunpack.c.l.b16 %v212
  %v218 = vpack.c.b16 %v215, %v215
  %v219 = vpack.c.b16 %v216, %v216
  %v220 = vpack.c.b16 %v217, %v217
  %221 = vrot.lane.b32.xlu0 %v218, 108
  %v222 = vpop.permute.xlu0 %221
  %223 = vrot.lane.b32.xlu0 %v219, 108
  %v224 = vpop.permute.xlu0 %223
  %225 = vrot.lane.b32.xlu0 %v220, 108
  %v226 = vpop.permute.xlu0 %225
  %vm227 = vcmask 883712
  %v228 = vsel %vm227, %v222, %v224
  %v229 = vsel %vm227, %v224, %v226
  %232 = vmatprep.subr.bf16.mxu0 0
  %233 = vmatpush1.bf16.msra.mxu0 %v139
  %234 = vmatprep.subr.bf16.mxu0 0
  %235 = vmatpush1.bf16.msra.mxu0 %v140
  %236 = vmatprep.subr.bf16.mxu0 0
  %237 = vmatpush1.bf16.msra.mxu0 %v141
  %238 = vmatprep.subr.bf16.mxu0 0
  %239 = vmatpush1.bf16.msra.mxu0 %v142
  %240 = vmatprep.subr.bf16.mxu0 0
  %241 = vmatpush1.bf16.msra.mxu0 %v143
  %242 = vmatprep.subr.bf16.mxu0 0
  %243 = vmatpush1.bf16.msra.mxu0 %v144
  %244 = vmatprep.subr.bf16.mxu0 0
  %245 = vmatpush1.bf16.msra.mxu0 %v145
  %246 = vmatprep.subr.bf16.mxu0 0
  %247 = vmatpush1.bf16.msra.mxu0 %v146
  %248 = vmatprep.subr.bf16.mxu0 0
  %249 = vmatpush1.bf16.msra.mxu0 %v147
  %250 = vmatprep.subr.bf16.mxu0 0
  %251 = vmatpush1.bf16.msra.mxu0 %v148
  %252 = vmatprep.subr.bf16.mxu0 0
  %253 = vmatpush1.bf16.msra.mxu0 %v149
  %254 = vmatprep.subr.bf16.mxu0 0
  %255 = vmatpush1.bf16.msra.mxu0 %v150
  %256 = vmatprep.subr.bf16.mxu0 0
  %257 = vmatpush1.bf16.msra.mxu0 %v151
  %258 = vmatprep.subr.bf16.mxu0 0
  %259 = vmatpush1.bf16.msra.mxu0 %v152
  %260 = vmatprep.subr.bf16.mxu0 0
  %261 = vmatpush1.bf16.msra.mxu0 %v153
  %262 = vmatprep.subr.bf16.mxu0 0
  %263 = vmatpush1.bf16.msra.mxu0 %v154
  %264 = vmatprep.mubr.bf16.mxu0 %v229
  %265 = vmatmul.mubr.bf16.gmra.mrb[0].mxu0 %v228
  %v266 = vpop.f32.mrb[0].mxu0
  %v267 = vadd.f32 0.0, %v266
  %v268 = vpop.f32.mrb[0].mxu0
  %v269 = vpop.f32.mrb[0].mxu0
  %v270 = vpop.f32.mrb[0].mxu0
  %271 = vdwg.mxu0
  %v272 = vmax.f32 %v206, %v267
  %v273 = vmin.f32 %v206, %v267
  %274 = vrot.lane.b32.xlu0 %v218, 88
  %v275 = vpop.permute.xlu0 %274
  %276 = vrot.lane.b32.xlu0 %v219, 88
  %v277 = vpop.permute.xlu0 %276
  %278 = vrot.lane.b32.xlu0 %v220, 88
  %v279 = vpop.permute.xlu0 %278
  %vm280 = vcmask 719872
  %v281 = vsel %vm280, %v275, %v277
  %v282 = vsel %vm280, %v277, %v279
  %285 = vmatprep.subr.bf16.mxu0 0
  %286 = vmatpush1.bf16.msra.mxu0 %v139
  %287 = vmatprep.subr.bf16.mxu0 0
  %288 = vmatpush1.bf16.msra.mxu0 %v140
  %289 = vmatprep.subr.bf16.mxu0 0
  %290 = vmatpush1.bf16.msra.mxu0 %v141
  %291 = vmatprep.subr.bf16.mxu0 0
  %292 = vmatpush1.bf16.msra.mxu0 %v142
  %293 = vmatprep.subr.bf16.mxu0 0
  %294 = vmatpush1.bf16.msra.mxu0 %v143
  %295 = vmatprep.subr.bf16.mxu0 0
  %296 = vmatpush1.bf16.msra.mxu0 %v144
  %297 = vmatprep.subr.bf16.mxu0 0
  %298 = vmatpush1.bf16.msra.mxu0 %v145
  %299 = vmatprep.subr.bf16.mxu0 0
  %300 = vmatpush1.bf16.msra.mxu0 %v146
  %301 = vmatprep.subr.bf16.mxu0 0
  %302 = vmatpush1.bf16.msra.mxu0 %v147
  %303 = vmatprep.subr.bf16.mxu0 0
  %304 = vmatpush1.bf16.msra.mxu0 %v148
  %305 = vmatprep.subr.bf16.mxu0 0
  %306 = vmatpush1.bf16.msra.mxu0 %v149
  %307 = vmatprep.subr.bf16.mxu0 0
  %308 = vmatpush1.bf16.msra.mxu0 %v150
  %309 = vmatprep.subr.bf16.mxu0 0
  %310 = vmatpush1.bf16.msra.mxu0 %v151
  %311 = vmatprep.subr.bf16.mxu0 0
  %312 = vmatpush1.bf16.msra.mxu0 %v152
  %313 = vmatprep.subr.bf16.mxu0 0
  %314 = vmatpush1.bf16.msra.mxu0 %v153
  %315 = vmatprep.subr.bf16.mxu0 0
  %316 = vmatpush1.bf16.msra.mxu0 %v154
  %317 = vmatprep.mubr.bf16.mxu0 %v282
  %318 = vmatmul.mubr.bf16.gmra.mrb[0].mxu0 %v281
  %v319 = vpop.f32.mrb[0].mxu0
  %v320 = vadd.f32 0.0, %v319
  %v321 = vpop.f32.mrb[0].mxu0
  %v322 = vpop.f32.mrb[0].mxu0
  %v323 = vpop.f32.mrb[0].mxu0
  %324 = vdwg.mxu0
  %v325 = vmax.f32 %v272, %v320
  %v326 = vmin.f32 %v273, %v320
  %327 = vrot.lane.b32.xlu0 %v218, 68
  %v328 = vpop.permute.xlu0 %327
  %329 = vrot.lane.b32.xlu0 %v219, 68
  %v330 = vpop.permute.xlu0 %329
  %331 = vrot.lane.b32.xlu0 %v220, 68
  %v332 = vpop.permute.xlu0 %331
  %vm333 = vcmask 556032
  %v334 = vsel %vm333, %v328, %v330
  %v335 = vsel %vm333, %v330, %v332
  %338 = vmatprep.subr.bf16.mxu0 0
  %339 = vmatpush1.bf16.msra.mxu0 %v139
  %340 = vmatprep.subr.bf16.mxu0 0
  %341 = vmatpush1.bf16.msra.mxu0 %v140
  %342 = vmatprep.subr.bf16.mxu0 0
  %343 = vmatpush1.bf16.msra.mxu0 %v141
  %344 = vmatprep.subr.bf16.mxu0 0
  %345 = vmatpush1.bf16.msra.mxu0 %v142
  %346 = vmatprep.subr.bf16.mxu0 0
  %347 = vmatpush1.bf16.msra.mxu0 %v143
  %348 = vmatprep.subr.bf16.mxu0 0
  %349 = vmatpush1.bf16.msra.mxu0 %v144
  %350 = vmatprep.subr.bf16.mxu0 0
  %351 = vmatpush1.bf16.msra.mxu0 %v145
  %352 = vmatprep.subr.bf16.mxu0 0
  %353 = vmatpush1.bf16.msra.mxu0 %v146
  %354 = vmatprep.subr.bf16.mxu0 0
  %355 = vmatpush1.bf16.msra.mxu0 %v147
  %356 = vmatprep.subr.bf16.mxu0 0
  %357 = vmatpush1.bf16.msra.mxu0 %v148
  %358 = vmatprep.subr.bf16.mxu0 0
  %359 = vmatpush1.bf16.msra.mxu0 %v149
  %360 = vmatprep.subr.bf16.mxu0 0
  %361 = vmatpush1.bf16.msra.mxu0 %v150
  %362 = vmatprep.subr.bf16.mxu0 0
  %363 = vmatpush1.bf16.msra.mxu0 %v151
  %364 = vmatprep.subr.bf16.mxu0 0
  %365 = vmatpush1.bf16.msra.mxu0 %v152
  %366 = vmatprep.subr.bf16.mxu0 0
  %367 = vmatpush1.bf16.msra.mxu0 %v153
  %368 = vmatprep.subr.bf16.mxu0 0
  %369 = vmatpush1.bf16.msra.mxu0 %v154
  %370 = vmatprep.mubr.bf16.mxu0 %v335
  %371 = vmatmul.mubr.bf16.gmra.mrb[0].mxu0 %v334
  %v372 = vpop.f32.mrb[0].mxu0
  %v373 = vadd.f32 0.0, %v372
  %v374 = vpop.f32.mrb[0].mxu0
  %v375 = vpop.f32.mrb[0].mxu0
  %v376 = vpop.f32.mrb[0].mxu0
  %377 = vdwg.mxu0
  %v378 = vmax.f32 %v325, %v373
  %v379 = vmin.f32 %v326, %v373
  %380 = vrot.lane.b32.xlu0 %v218, 48
  %v381 = vpop.permute.xlu0 %380
  %382 = vrot.lane.b32.xlu0 %v219, 48
  %v383 = vpop.permute.xlu0 %382
  %384 = vrot.lane.b32.xlu0 %v220, 48
  %v385 = vpop.permute.xlu0 %384
  %vm386 = vcmask 392192
  %v387 = vsel %vm386, %v381, %v383
  %v388 = vsel %vm386, %v383, %v385
  %391 = vmatprep.subr.bf16.mxu0 0
  %392 = vmatpush1.bf16.msra.mxu0 %v139
  %393 = vmatprep.subr.bf16.mxu0 0
  %394 = vmatpush1.bf16.msra.mxu0 %v140
  %395 = vmatprep.subr.bf16.mxu0 0
  %396 = vmatpush1.bf16.msra.mxu0 %v141
  %397 = vmatprep.subr.bf16.mxu0 0
  %398 = vmatpush1.bf16.msra.mxu0 %v142
  %399 = vmatprep.subr.bf16.mxu0 0
  %400 = vmatpush1.bf16.msra.mxu0 %v143
  %401 = vmatprep.subr.bf16.mxu0 0
  %402 = vmatpush1.bf16.msra.mxu0 %v144
  %403 = vmatprep.subr.bf16.mxu0 0
  %404 = vmatpush1.bf16.msra.mxu0 %v145
  %405 = vmatprep.subr.bf16.mxu0 0
  %406 = vmatpush1.bf16.msra.mxu0 %v146
  %407 = vmatprep.subr.bf16.mxu0 0
  %408 = vmatpush1.bf16.msra.mxu0 %v147
  %409 = vmatprep.subr.bf16.mxu0 0
  %410 = vmatpush1.bf16.msra.mxu0 %v148
  %411 = vmatprep.subr.bf16.mxu0 0
  %412 = vmatpush1.bf16.msra.mxu0 %v149
  %413 = vmatprep.subr.bf16.mxu0 0
  %414 = vmatpush1.bf16.msra.mxu0 %v150
  %415 = vmatprep.subr.bf16.mxu0 0
  %416 = vmatpush1.bf16.msra.mxu0 %v151
  %417 = vmatprep.subr.bf16.mxu0 0
  %418 = vmatpush1.bf16.msra.mxu0 %v152
  %419 = vmatprep.subr.bf16.mxu0 0
  %420 = vmatpush1.bf16.msra.mxu0 %v153
  %421 = vmatprep.subr.bf16.mxu0 0
  %422 = vmatpush1.bf16.msra.mxu0 %v154
  %423 = vmatprep.mubr.bf16.mxu0 %v388
  %424 = vmatmul.mubr.bf16.gmra.mrb[0].mxu0 %v387
  %v425 = vpop.f32.mrb[0].mxu0
  %v426 = vadd.f32 0.0, %v425
  %v427 = vpop.f32.mrb[0].mxu0
  %v428 = vpop.f32.mrb[0].mxu0
  %v429 = vpop.f32.mrb[0].mxu0
  %430 = vdwg.mxu0
  %v431 = vmax.f32 %v378, %v426
  %v432 = vmin.f32 %v379, %v426
  %433 = vrot.lane.b32.xlu0 %v218, 28
  %v434 = vpop.permute.xlu0 %433
  %435 = vrot.lane.b32.xlu0 %v219, 28
  %v436 = vpop.permute.xlu0 %435
  %437 = vrot.lane.b32.xlu0 %v220, 28
  %v438 = vpop.permute.xlu0 %437
  %vm439 = vcmask 228352
  %v440 = vsel %vm439, %v434, %v436
  %v441 = vsel %vm439, %v436, %v438
  %444 = vmatprep.subr.bf16.mxu0 0
  %445 = vmatpush1.bf16.msra.mxu0 %v139
  %446 = vmatprep.subr.bf16.mxu0 0
  %447 = vmatpush1.bf16.msra.mxu0 %v140
  %448 = vmatprep.subr.bf16.mxu0 0
  %449 = vmatpush1.bf16.msra.mxu0 %v141
  %450 = vmatprep.subr.bf16.mxu0 0
  %451 = vmatpush1.bf16.msra.mxu0 %v142
  %452 = vmatprep.subr.bf16.mxu0 0
  %453 = vmatpush1.bf16.msra.mxu0 %v143
  %454 = vmatprep.subr.bf16.mxu0 0
  %455 = vmatpush1.bf16.msra.mxu0 %v144
  %456 = vmatprep.subr.bf16.mxu0 0
  %457 = vmatpush1.bf16.msra.mxu0 %v145
  %458 = vmatprep.subr.bf16.mxu0 0
  %459 = vmatpush1.bf16.msra.mxu0 %v146
  %460 = vmatprep.subr.bf16.mxu0 0
  %461 = vmatpush1.bf16.msra.mxu0 %v147
  %462 = vmatprep.subr.bf16.mxu0 0
  %463 = vmatpush1.bf16.msra.mxu0 %v148
  %464 = vmatprep.subr.bf16.mxu0 0
  %465 = vmatpush1.bf16.msra.mxu0 %v149
  %466 = vmatprep.subr.bf16.mxu0 0
  %467 = vmatpush1.bf16.msra.mxu0 %v150
  %468 = vmatprep.subr.bf16.mxu0 0
  %469 = vmatpush1.bf16.msra.mxu0 %v151
  %470 = vmatprep.subr.bf16.mxu0 0
  %471 = vmatpush1.bf16.msra.mxu0 %v152
  %472 = vmatprep.subr.bf16.mxu0 0
  %473 = vmatpush1.bf16.msra.mxu0 %v153
  %474 = vmatprep.subr.bf16.mxu0 0
  %475 = vmatpush1.bf16.msra.mxu0 %v154
  %476 = vmatprep.mubr.bf16.mxu0 %v441
  %477 = vmatmul.mubr.bf16.gmra.mrb[0].mxu0 %v440
  %v478 = vpop.f32.mrb[0].mxu0
  %v479 = vadd.f32 0.0, %v478
  %v480 = vpop.f32.mrb[0].mxu0
  %v481 = vpop.f32.mrb[0].mxu0
  %v482 = vpop.f32.mrb[0].mxu0
  %483 = vdwg.mxu0
  %v484 = vmax.f32 %v431, %v479
  %v485 = vmin.f32 %v432, %v479
  %486 = vrot.lane.b32.xlu0 %v218, 8
  %v487 = vpop.permute.xlu0 %486
  %488 = vrot.lane.b32.xlu0 %v219, 8
  %v489 = vpop.permute.xlu0 %488
  %490 = vrot.lane.b32.xlu0 %v220, 8
  %v491 = vpop.permute.xlu0 %490
  %vm492 = vcmask 64512
  %v493 = vsel %vm492, %v487, %v489
  %v494 = vsel %vm492, %v489, %v491
  %497 = vmatprep.subr.bf16.mxu0 0
  %498 = vmatpush1.bf16.msra.mxu0 %v139
  %499 = vmatprep.subr.bf16.mxu0 0
  %500 = vmatpush1.bf16.msra.mxu0 %v140
  %501 = vmatprep.subr.bf16.mxu0 0
  %502 = vmatpush1.bf16.msra.mxu0 %v141
  %503 = vmatprep.subr.bf16.mxu0 0
  %504 = vmatpush1.bf16.msra.mxu0 %v142
  %505 = vmatprep.subr.bf16.mxu0 0
  %506 = vmatpush1.bf16.msra.mxu0 %v143
  %507 = vmatprep.subr.bf16.mxu0 0
  %508 = vmatpush1.bf16.msra.mxu0 %v144
  %509 = vmatprep.subr.bf16.mxu0 0
  %510 = vmatpush1.bf16.msra.mxu0 %v145
  %511 = vmatprep.subr.bf16.mxu0 0
  %512 = vmatpush1.bf16.msra.mxu0 %v146
  %513 = vmatprep.subr.bf16.mxu0 0
  %514 = vmatpush1.bf16.msra.mxu0 %v147
  %515 = vmatprep.subr.bf16.mxu0 0
  %516 = vmatpush1.bf16.msra.mxu0 %v148
  %517 = vmatprep.subr.bf16.mxu0 0
  %518 = vmatpush1.bf16.msra.mxu0 %v149
  %519 = vmatprep.subr.bf16.mxu0 0
  %520 = vmatpush1.bf16.msra.mxu0 %v150
  %521 = vmatprep.subr.bf16.mxu0 0
  %522 = vmatpush1.bf16.msra.mxu0 %v151
  %523 = vmatprep.subr.bf16.mxu0 0
  %524 = vmatpush1.bf16.msra.mxu0 %v152
  %525 = vmatprep.subr.bf16.mxu0 0
  %526 = vmatpush1.bf16.msra.mxu0 %v153
  %527 = vmatprep.subr.bf16.mxu0 0
  %528 = vmatpush1.bf16.msra.mxu0 %v154
  %529 = vmatprep.mubr.bf16.mxu0 %v494
  %530 = vmatmul.mubr.bf16.gmra.mrb[0].mxu0 %v493
  %v531 = vpop.f32.mrb[0].mxu0
  %v532 = vadd.f32 0.0, %v531
  %v533 = vpop.f32.mrb[0].mxu0
  %v534 = vpop.f32.mrb[0].mxu0
  %v535 = vpop.f32.mrb[0].mxu0
  %536 = vdwg.mxu0
  %v537 = vmax.f32 %v484, %v532
  %v538 = vmin.f32 %v485, %v532
  %v539 = vld [vmem:[%s0 + $0x4] sm:$0xff]
  %v540 = vld [vmem:[%s0 + $0xc] sm:$0xf]
  %v543 = vunpack.c.l.b16 %v539
  %v544 = vunpack.c.h.b16 %v539
  %v545 = vunpack.c.l.b16 %v540
  %v546 = vpack.c.b16 %v543, %v543
  %v547 = vpack.c.b16 %v544, %v544
  %v548 = vpack.c.b16 %v545, %v545
  %549 = vrot.lane.b32.xlu0 %v546, 116
  %v550 = vpop.permute.xlu0 %549
  %551 = vrot.lane.b32.xlu0 %v547, 116
  %v552 = vpop.permute.xlu0 %551
  %553 = vrot.lane.b32.xlu0 %v548, 116
  %v554 = vpop.permute.xlu0 %553
  %vm555 = vcmask 949248
  %v556 = vsel %vm555, %v550, %v552
  %v557 = vsel %vm555, %v552, %v554
  %560 = vmatprep.subr.bf16.mxu0 0
  %561 = vmatpush1.bf16.msra.mxu0 %v139
  %562 = vmatprep.subr.bf16.mxu0 0
  %563 = vmatpush1.bf16.msra.mxu0 %v140
  %564 = vmatprep.subr.bf16.mxu0 0
  %565 = vmatpush1.bf16.msra.mxu0 %v141
  %566 = vmatprep.subr.bf16.mxu0 0
  %567 = vmatpush1.bf16.msra.mxu0 %v142
  %568 = vmatprep.subr.bf16.mxu0 0
  %569 = vmatpush1.bf16.msra.mxu0 %v143
  %570 = vmatprep.subr.bf16.mxu0 0
  %571 = vmatpush1.bf16.msra.mxu0 %v144
  %572 = vmatprep.subr.bf16.mxu0 0
  %573 = vmatpush1.bf16.msra.mxu0 %v145
  %574 = vmatprep.subr.bf16.mxu0 0
  %575 = vmatpush1.bf16.msra.mxu0 %v146
  %576 = vmatprep.subr.bf16.mxu0 0
  %577 = vmatpush1.bf16.msra.mxu0 %v147
  %578 = vmatprep.subr.bf16.mxu0 0
  %579 = vmatpush1.bf16.msra.mxu0 %v148
  %580 = vmatprep.subr.bf16.mxu0 0
  %581 = vmatpush1.bf16.msra.mxu0 %v149
  %582 = vmatprep.subr.bf16.mxu0 0
  %583 = vmatpush1.bf16.msra.mxu0 %v150
  %584 = vmatprep.subr.bf16.mxu0 0
  %585 = vmatpush1.bf16.msra.mxu0 %v151
  %586 = vmatprep.subr.bf16.mxu0 0
  %587 = vmatpush1.bf16.msra.mxu0 %v152
  %588 = vmatprep.subr.bf16.mxu0 0
  %589 = vmatpush1.bf16.msra.mxu0 %v153
  %590 = vmatprep.subr.bf16.mxu0 0
  %591 = vmatpush1.bf16.msra.mxu0 %v154
  %592 = vmatprep.mubr.bf16.mxu0 %v557
  %593 = vmatmul.mubr.bf16.gmra.mrb[0].mxu0 %v556
  %v594 = vpop.f32.mrb[0].mxu0
  %v595 = vadd.f32 0.0, %v594
  %v596 = vpop.f32.mrb[0].mxu0
  %v597 = vpop.f32.mrb[0].mxu0
  %v598 = vpop.f32.mrb[0].mxu0
  %599 = vdwg.mxu0
  %v600 = vmax.f32 %v537, %v595
  %v601 = vmin.f32 %v538, %v595
  %v602 = vsub.f32 0.0, %v601
  %vm603 = vcmp.ge.f32.partialorder %v600, %v602
  %v604 = vsel %vm603, %v600, %v601
  %v605 = vld [vmem:[%s0] sm:$0xff]
  %v606 = vld [vmem:[%s0 + $0x8] sm:$0xff]
  %v607 = vunpack.c.l.bf16 %v605
  %v608 = vunpack.c.h.bf16 %v605
  %v609 = vunpack.c.l.bf16 %v606
  %v610 = vunpack.c.h.bf16 %v606
  %v611 = vld [vmem:[%s1] sm:$0xf]
  %v613 = vlaneseq
  %v614 = vshrl.u32 %v613, 7
  %v615 = vsub.s32 0, %v614
  %v616 = vrot.slane %v611, %v615
  %v617 = vlaneseq
  %v618 = vshrl.u32 %v617, 7
  %v619 = vsub.s32 1, %v618
  %v620 = vrot.slane %v611, %v619
  %v621 = vlaneseq
  %v622 = vshrl.u32 %v621, 7
  %v623 = vsub.s32 2, %v622
  %v624 = vrot.slane %v611, %v623
  %v625 = vlaneseq
  %v626 = vshrl.u32 %v625, 7
  %v627 = vsub.s32 3, %v626
  %v628 = vrot.slane %v611, %v627
  %v633 = vmul.f32 %v607, %v616
  %v634 = vmul.f32 %v608, %v620
  %v635 = vmul.f32 %v609, %v624
  %v636 = vmul.f32 %v610, %v628
  %v637 = vadd.f32 %v633, %v634
  %v638 = vadd.f32 %v637, %v635
  %v639 = vadd.f32 %v638, %v636
  %640 = vadd.xlane.f32.xlu0 %v639
  %v641 = vpop.xlane.xlu0 %640
  %v642 = vsub.f32 0.0, %v641
  %v643 = vld [vmem:[%s3] sm:$0x1]
  %v645 = vlaneseq
  %v646 = vshrl.u32 %v645, 7
  %v647 = vsub.s32 0, %v646
  %v648 = vrot.slane %v643, %v647
  %v650 = vsub.f32 %v648, %v604
  %v651 = vld [vmem:[%s5] sm:$0x1]
  %v653 = vlaneseq
  %v654 = vshrl.u32 %v653, 7
  %v655 = vsub.s32 0, %v654
  %v656 = vrot.slane %v651, %v655
  %v658 = vmul.f32 %v650, %v656
  %v659 = vmul.f32 %v658, 0.5
  %v660 = vmul.f32 %v659, %v658
  %v661 = vrcp.pop 1.4142135
  %v662 = vmul.f32 %v658, %v661
  %v663 = vand.u32 2147483647, %v662
  %v664 = vmul.f32 %v663, 0.3275911
  %v665 = vadd.f32 %v664, 1.0
  %v666 = vrcp.pop %v665
  %v667 = vmul.f32 1.0, %v666
  %v668 = vmul.f32 %v667, 1.0614054
  %v669 = vadd.f32 %v668, -1.4531521
  %v670 = vmul.f32 %v667, %v669
  %v671 = vadd.f32 %v670, 1.4214138
  %v672 = vmul.f32 %v667, %v671
  %v673 = vadd.f32 %v672, -0.28449672
  %v674 = vmul.f32 %v667, %v673
  %v675 = vadd.f32 %v674, 0.2548296
  %v676 = vmul.f32 %v667, %v675
  %v677 = vsub.f32 0.0, %v663
  %v678 = vmul.f32 %v677, %v663
  %v679 = vmul.f32 %v678, 1.442695
  %v680 = vpow.pop %v679
  %v681 = vmul.f32 %v676, %v680
  %vm682 = vcmp.ge.f32.partialorder %v662, 0.0
  %v683 = vsub.f32 2.0, %v681
  %v684 = vsel %vm682, %v681, %v683
  %v685 = vlog2.pop %v684
  %v686 = vmul.f32 %v685, 0.6931472
  %v687 = vadd.f32 %v660, %v686
  %v688 = vadd.f32 %v687, 0.22579135
  %v689 = vmax.f32 %v658, 1.0
  %v690 = vmul.f32 %v689, %v689
  %v691 = vlog2.pop %v689
  %v692 = vmul.f32 %v691, 0.6931472
  %v693 = vsub.f32 0.0, %v692
  %v694 = vrcp.pop %v690
  %v695 = vmul.f32 1.0, %v694
  %v696 = vsub.f32 1.0, %v695
  %v697 = vmul.f32 %v690, %v690
  %v698 = vrcp.pop %v697
  %v699 = vmul.f32 3.0, %v698
  %v700 = vadd.f32 %v696, %v699
  %v701 = vlog2.pop %v700
  %v702 = vmul.f32 %v701, 0.6931472
  %v703 = vadd.f32 %v693, %v702
  %vm704 = vcmp.lt.f32.partialorder %v658, 6.0
  %v705 = vsel %vm704, %v688, %v703
  %v706 = vld [vmem:[%s7] sm:$0x1]
  %v708 = vlaneseq
  %v709 = vshrl.u32 %v708, 7
  %v710 = vsub.s32 0, %v709
  %v711 = vrot.slane %v706, %v710
  %v713 = vsub.f32 %v705, %v711
  %v714 = vld [vmem:[%s4] sm:$0x1]
  %v716 = vlaneseq
  %v717 = vshrl.u32 %v716, 7
  %v718 = vsub.s32 0, %v717
  %v719 = vrot.slane %v714, %v718
  %v721 = vadd.f32 %v604, %v719
  %v722 = vld [vmem:[%s6] sm:$0x1]
  %v724 = vlaneseq
  %v725 = vshrl.u32 %v724, 7
  %v726 = vsub.s32 0, %v725
  %v727 = vrot.slane %v722, %v726
  %v729 = vmul.f32 %v721, %v727
  %v730 = vmul.f32 %v729, 0.5
  %v731 = vmul.f32 %v730, %v729
  %v732 = vmul.f32 %v729, %v661
  %v733 = vand.u32 2147483647, %v732
  %v734 = vmul.f32 %v733, 0.3275911
  %v735 = vadd.f32 %v734, 1.0
  %v736 = vrcp.pop %v735
  %v737 = vmul.f32 1.0, %v736
  %v738 = vmul.f32 %v737, 1.0614054
  %v739 = vadd.f32 %v738, -1.4531521
  %v740 = vmul.f32 %v737, %v739
  %v741 = vadd.f32 %v740, 1.4214138
  %v742 = vmul.f32 %v737, %v741
  %v743 = vadd.f32 %v742, -0.28449672
  %v744 = vmul.f32 %v737, %v743
  %v745 = vadd.f32 %v744, 0.2548296
  %v746 = vmul.f32 %v737, %v745
  %v747 = vsub.f32 0.0, %v733
  %v748 = vmul.f32 %v747, %v733
  %v749 = vmul.f32 %v748, 1.442695
  %v750 = vpow.pop %v749
  %v751 = vmul.f32 %v746, %v750
  %vm752 = vcmp.ge.f32.partialorder %v732, 0.0
  %v753 = vsub.f32 2.0, %v751
  %v754 = vsel %vm752, %v751, %v753
  %v755 = vlog2.pop %v754
  %v756 = vmul.f32 %v755, 0.6931472
  %v757 = vadd.f32 %v731, %v756
  %v758 = vadd.f32 %v757, 0.22579135
  %v759 = vmax.f32 %v729, 1.0
  %v760 = vmul.f32 %v759, %v759
  %v761 = vlog2.pop %v759
  %v762 = vmul.f32 %v761, 0.6931472
  %v763 = vsub.f32 0.0, %v762
  %v764 = vrcp.pop %v760
  %v765 = vmul.f32 1.0, %v764
  %v766 = vsub.f32 1.0, %v765
  %v767 = vmul.f32 %v760, %v760
  %v768 = vrcp.pop %v767
  %v769 = vmul.f32 3.0, %v768
  %v770 = vadd.f32 %v766, %v769
  %v771 = vlog2.pop %v770
  %v772 = vmul.f32 %v771, 0.6931472
  %v773 = vadd.f32 %v763, %v772
  %vm774 = vcmp.lt.f32.partialorder %v729, 6.0
  %v775 = vsel %vm774, %v758, %v773
  %v776 = vld [vmem:[%s8] sm:$0x1]
  %v778 = vlaneseq
  %v779 = vshrl.u32 %v778, 7
  %v780 = vsub.s32 0, %v779
  %v781 = vrot.slane %v776, %v780
  %v783 = vsub.f32 %v775, %v781
  %v784 = vmax.f32 %v713, %v783
  %v785 = vsub.f32 %v713, %v784
  %v786 = vmul.f32 %v785, 1.442695
  %v787 = vpow.pop %v786
  %v788 = vsub.f32 %v783, %v784
  %v789 = vmul.f32 %v788, 1.442695
  %v790 = vpow.pop %v789
  %v791 = vadd.f32 %v787, %v790
  %v792 = vlog2.pop %v791
  %v793 = vmul.f32 %v792, 0.6931472
  %v794 = vadd.f32 %v784, %v793
  %v795 = vsub.f32 %v642, %v794
  %796 = vst [vmem:[%s9] sm:$0xff] %v795
  %s797 = smul.u32 0, 8
  %v798 = vlaneseq
  %v799 = vshrl.u32 %v798, 7
  %v800 = vstv %s797
  %v801 = vadd.s32 %v800, %v799
  %vm802 = vcmp.lt.s32.totalorder %v801, 8
  %v803 = vsel %vm802, 1, 0
  %v804 = vcvt.s32.f32 %v803
  %v805 = vmul.f32 %v795, %v804
  %v806 = vrot.slane %v805, 4
  %v807 = vadd.f32 %v805, %v806
  %v808 = vrot.slane %v807, 2
  %v809 = vadd.f32 %v807, %v808
  %v810 = vrot.slane %v809, 1
  %v811 = vadd.f32 %v809, %v810
  %v812 = vmul.f32 %v805, %v795
  %v813 = vrot.slane %v812, 4
  %v814 = vadd.f32 %v812, %v813
  %v815 = vrot.slane %v814, 2
  %v816 = vadd.f32 %v814, %v815
  %v817 = vrot.slane %v816, 1
  %v818 = vadd.f32 %v816, %v817
  %vm819 = vcmp.eq.s32.totalorder %v799, 0
  %v820 = vsel %vm819, %v811, 0.0
  %vm821 = vcmp.eq.s32.totalorder %v799, 1
  %v822 = vsel %vm821, %v818, 0.0
  %v823 = vadd.f32 %v820, %v822
  %824 = vst [vmem:[%s10] sm:$0xff] %v823
  // Predicated region
  $region38: #{feature_net_forward.2} parent=0 // pred_check
    _
  $region39: #{feature_net_forward.2} parent=0 // pred_check_branch
    %826 = sbr.rel (0) target = $region41
  $region40: #{feature_net_forward.2} parent=0 // pred_region
    _
  $region41: #{feature_net_forward.2} parent=0 // pred_fallthru
    _
  // Predicated region
  $region42: #{feature_net_forward.2} parent=0 // pred_check
    _
  $region43: #{feature_net_forward.2} parent=0 // pred_check_branch
    %828 = sbr.rel (0) target = $region45
  $region44: #{feature_net_forward.2} parent=0 // pred_region
    _
  $region45: #{feature_net_forward.2} parent=0 // pred_fallthru
    _
  // Predicated region
  $region46: #{feature_net_forward.2} parent=0 // pred_check
    _
  $region47: #{feature_net_forward.2} parent=0 // pred_check_branch
    %830 = sbr.rel (0) target = $region49
  $region48: #{feature_net_forward.2} parent=0 // pred_region
    _
  $region49: #{feature_net_forward.2} parent=0 // pred_fallthru
    _
  // Predicated region
  $region50: #{feature_net_forward.2} parent=0 // pred_check
    _
  $region51: #{feature_net_forward.2} parent=0 // pred_check_branch
    %832 = sbr.rel (0) target = $region53
  $region52: #{feature_net_forward.2} parent=0 // pred_region
    _
  $region53: #{feature_net_forward.2} parent=0 // pred_fallthru
    _

</llo_original>
